<compile_context>
chip_gen: v5e
topology: v5e:2x2
jax: 0.10.0
libtpu: 0.0.40
codegen_flags: <defaults>
</compile_context>

<pallas_src>
import jax
import jax.numpy as jnp
from jax import lax
from jax.experimental import pallas as pl
from jax.experimental.pallas import tpu as pltpu


def _contrastive_loss_kernel(x_ref, o_ref, m_sc, s_sc, pos_sc):
    j = pl.program_id(1)
    nn = pl.num_programs(1)

    x = x_ref[...].astype(jnp.float32)                      # (TB, TN)

    # --- first N tile: grab the positive logit, init the online logsumexp ---
    @pl.when(j == 0)
    def _():
        pos_sc[...] = x[:, 0:1]                             # x[:, 0]   (TB, 1)
        col = lax.broadcasted_iota(jnp.int32, x.shape, 1)
        xm = jnp.where(col >= 1, x, jnp.float32(-jnp.inf))  # mask only col 0
        m0 = jnp.max(xm, axis=1, keepdims=True)             # (TB, 1)
        s_sc[...] = jnp.sum(jnp.exp(xm - m0), axis=1, keepdims=True)
        m_sc[...] = m0

    # --- inner N tiles: pure online max / exp / sum (no mask) ---
    @pl.when(j > 0)
    def _():
        m_prev = m_sc[...]
        m_new = jnp.maximum(m_prev, jnp.max(x, axis=1, keepdims=True))
        s_sc[...] = (s_sc[...] * jnp.exp(m_prev - m_new)
                     + jnp.sum(jnp.exp(x - m_new), axis=1, keepdims=True))
        m_sc[...] = m_new

    # --- last N tile: per-batch-tile partial sum, one lane-dense (8,128) blk ---
    @pl.when(j == nn - 1)
    def _():
        lse = m_sc[...] + jnp.log(s_sc[...])                # (TB, 1)
        per_row = lse - pos_sc[...]                         # (TB, 1)
        tile_sum = jnp.sum(per_row, axis=0, keepdims=True)  # (1, 1)
        o_ref[...] = jnp.broadcast_to(tile_sum, o_ref.shape).astype(o_ref.dtype)


def _vmem_capacity_bytes():
    try:
        return int(pltpu.get_tpu_info().vmem_capacity_bytes)
    except Exception:
        return 128 * 1024 * 1024  # conservative default (v5e / v6e)


def _sublane_align(dtype):
    # dtype-aware sublane multiple: f32 -> 8, bf16 -> 16, int8/fp8 -> 32
    return {4: 8, 2: 16, 1: 32}.get(jnp.dtype(dtype).itemsize, 8)


def _pick_tile(dim, target, align):
    """Largest divisor of `dim` that is a multiple of `align` and <= target.

    Falls back to the full dimension (always a legal block size)."""
    if dim <= target:
        return dim
    t = (min(target, dim) // align) * align
    while t >= align:
        if dim % t == 0:
            return t
        t -= align
    return dim


def contrastive_loss(x, labels=None, *, block_b=None, block_n=None):
    """Pallas TPU forward of the contrastive_loss module (labels unused)."""
    del labels  # unused by the reference forward
    B, N = x.shape

    if N < 2:
        # Reference: torch.logsumexp over an empty slice is -inf.
        return jnp.mean(-x[:, 0].astype(jnp.float32)) + jnp.float32(-jnp.inf)

    itemsize = jnp.dtype(x.dtype).itemsize
    align = _sublane_align(x.dtype)
    vmem_cap = _vmem_capacity_bytes()
    # Per-buffer input block byte target: ~8 MiB on 128 MiB v5e/v6e, ~4 MiB on
    # 64 MiB v7x (double-buffered input then uses ~1/8 of VMEM).
    tile_budget = vmem_cap // 16
    tn_target = 4096 if vmem_cap > (64 << 20) else 2048

    tn = block_n if block_n is not None else _pick_tile(N, tn_target, 128)
    assert tn >= 2, "block_n must cover the positive plus at least one negative"

    if block_b is not None:
        tb = block_b
    else:
        # Byte-budget-driven batch tile: keep each input block ~2-8 MiB even
        # when N (and hence TN) is small, instead of a hard row cap.
        budget_tb = max(align,
                        (tile_budget // max(1, tn * itemsize)) // align * align)
        # Megacore (v7x): keep >= 2 batch grid steps while blocks stay >= ~2 MiB
        # so the "parallel" batch axis can shard across both TensorCores.
        half = (B // 2 // align) * align
        if half >= align and half * tn * itemsize >= (2 << 20):
            budget_tb = min(budget_tb, half)
        tb = _pick_tile(B, min(B, budget_tb), align)

    assert B % tb == 0 and N % tn == 0, (B, N, tb, tn)
    grid_b, grid_n = B // tb, N // tn

    # Explicit scoped-VMEM budget: double-buffered input + tiny output + scratch
    # ((tb, 1) f32 scratch pads lanes to 128) + headroom.
    in_bytes = tb * tn * itemsize
    out_bytes = 8 * 128 * 4
    pad_tb = -(-tb // 8) * 8
    scratch_bytes = 3 * pad_tb * 128 * 4
    vmem_limit = min(vmem_cap,
                     int(2 * in_bytes + 2 * out_bytes + scratch_bytes + (8 << 20)))

    partial = pl.pallas_call(
        _contrastive_loss_kernel,
        out_shape=jax.ShapeDtypeStruct((grid_b * 8, 128), jnp.float32),
        grid_spec=pltpu.PrefetchScalarGridSpec(
            num_scalar_prefetch=0,
            grid=(grid_b, grid_n),
            in_specs=[pl.BlockSpec((tb, tn), lambda i, j: (i, j))],
            out_specs=pl.BlockSpec((8, 128), lambda i, j: (i, 0)),
            scratch_shapes=[
                pltpu.VMEM((tb, 1), jnp.float32),   # running max
                pltpu.VMEM((tb, 1), jnp.float32),   # running sum(exp)
                pltpu.VMEM((tb, 1), jnp.float32),   # positive logit x[:, 0]
            ],
        ),
        compiler_params=pltpu.CompilerParams(
            dimension_semantics=("parallel", "arbitrary"),
            vmem_limit_bytes=vmem_limit,
        ),
    )(x)

    # Each (8, 128) output block holds 1024 identical copies of its batch
    # tile's loss sum (exact power-of-two duplication), so one tiny reduce +
    # a single divide-by-B recovers the mean.
    return jnp.sum(partial) / jnp.float32(8 * 128 * B)


def contrastive_loss_ref(x):
    # Pure-JAX reference for correctness check.
    xf = x.astype(jnp.float32)
    pos = xf[:, 0]
    lse = jax.scipy.special.logsumexp(xf[:, 1:], axis=1)
    return jnp.mean(-pos + lse)


if __name__ == "__main__":
    key = jax.random.PRNGKey(0)
    kx, kl, kx2, kx3 = jax.random.split(key, 4)

    # Primary small case (batch of 8 rows, 1 positive + 31 negative logits).
    B, N = 8, 32
    x = jax.random.normal(kx, (B, N), dtype=jnp.float32)
    labels = jax.random.randint(kl, (B,), 0, N)   # unused, matches signature

    out = jax.block_until_ready(contrastive_loss(x, labels))
    ref = contrastive_loss_ref(x)
    assert jnp.allclose(out, ref, atol=1e-5, rtol=1e-5), (out, ref)

    # Multi-tile case: grid = (2, 2); exercises the online logsumexp across N
    # tiles and the per-batch-tile partial-sum outputs.
    B2, N2 = 16, 256
    x2 = jax.random.normal(kx2, (B2, N2), dtype=jnp.float32) * 3.0
    out2 = jax.block_until_ready(
        contrastive_loss(x2, None, block_b=8, block_n=128))
    ref2 = contrastive_loss_ref(x2)
    assert jnp.allclose(out2, ref2, atol=1e-5, rtol=1e-5), (out2, ref2)

    # bf16 inputs (halves HBM read traffic); accumulation stays f32 in-kernel.
    B3, N3 = 32, 512
    x3 = (jax.random.normal(kx3, (B3, N3), dtype=jnp.float32) * 2.0
          ).astype(jnp.bfloat16)
    out3 = jax.block_until_ready(contrastive_loss(x3, None))
    ref3 = contrastive_loss_ref(x3)
    assert jnp.allclose(out3, ref3, atol=1e-4, rtol=1e-4), (out3, ref3)

    print("KERNEL_OK")
</pallas_src>

<mosaic_0001>
module attributes {stable_mosaic.version = 11 : i64} {
  func.func @_contrastive_loss_kernel(%arg0: i32, %arg1: i32, %arg2: memref<8x32xf32, #tpu.memory_space<vmem>>, %arg3: memref<8x128xf32, #tpu.memory_space<vmem>>, %arg4: memref<8x1xf32, #tpu.memory_space<vmem>>, %arg5: memref<8x1xf32, #tpu.memory_space<vmem>>, %arg6: memref<8x1xf32, #tpu.memory_space<vmem>>) attributes {dimension_semantics = [#tpu.dimension_semantics<parallel>, #tpu.dimension_semantics<arbitrary>], iteration_bounds = array<i64: 1, 1>, scalar_prefetch = 0 : i64, scratch_operands = 3 : i64, tpu.core_type = #tpu.core_type<tc>, window_params = [{transform_indices = @transform_0, window_bounds = array<i64: 8, 32>}, {transform_indices = @transform_1, window_bounds = array<i64: 8, 128>}]} {
    %c0 = arith.constant 0 : index
    %c0_0 = arith.constant 0 : index
    %0 = vector.load %arg2[%c0, %c0_0] : memref<8x32xf32, #tpu.memory_space<vmem>>, vector<8x32xf32>
    %c0_i32 = arith.constant 0 : i32
    %1 = arith.cmpi eq, %arg1, %c0_i32 : i32
    %2 = arith.extui %1 : i1 to i32
    %c0_i32_1 = arith.constant 0 : i32
    %3 = arith.cmpi ne, %2, %c0_i32_1 : i32
    scf.if %3 {
      %10 = vector.extract_strided_slice %0 {offsets = [0, 0], sizes = [8, 1], strides = [1, 1]} : vector<8x32xf32> to vector<8x1xf32>
      %c0_6 = arith.constant 0 : index
      %c0_7 = arith.constant 0 : index
      %11 = vector.load %arg6[%c0_6, %c0_7] : memref<8x1xf32, #tpu.memory_space<vmem>>, vector<8x1xf32>
      tpu.vector_store %arg6[%c0_6, %c0_7], %10 {strides = array<i32>} : memref<8x1xf32, #tpu.memory_space<vmem>>, vector<8x1xf32>,
      %12 = tpu.iota {dimensions = array<i32: 1>} : vector<8x32xi32>
      %c1_i32 = arith.constant 1 : i32
      %13 = vector.broadcast %c1_i32 : i32 to vector<8x32xi32>
      %14 = arith.cmpi sge, %12, %13 : vector<8x32xi32>
      %cst = arith.constant 0xFF800000 : f32
      %15 = vector.broadcast %cst : f32 to vector<8x32xf32>
      %16 = arith.select %14, %0, %15 : vector<8x32xi1>, vector<8x32xf32>
      %cst_8 = arith.constant dense<0xFF800000> : vector<8xf32>
      %17 = vector.multi_reduction <maximumf>, %16, %cst_8 [1] : vector<8x32xf32> to vector<8xf32>
      %18 = vector.shape_cast %17 : vector<8xf32> to vector<8x1xf32>
      %19 = vector.broadcast %18 : vector<8x1xf32> to vector<8x32xf32>
      %20 = arith.subf %16, %19 : vector<8x32xf32>
      %21 = math.exp %20 : vector<8x32xf32>
      %cst_9 = arith.constant dense<0.000000e+00> : vector<8xf32>
      %22 = vector.multi_reduction <add>, %21, %cst_9 [1] : vector<8x32xf32> to vector<8xf32>
      %23 = vector.shape_cast %22 : vector<8xf32> to vector<8x1xf32>
      %c0_10 = arith.constant 0 : index
      %c0_11 = arith.constant 0 : index
      %24 = vector.load %arg5[%c0_10, %c0_11] : memref<8x1xf32, #tpu.memory_space<vmem>>, vector<8x1xf32>
      tpu.vector_store %arg5[%c0_10, %c0_11], %23 {strides = array<i32>} : memref<8x1xf32, #tpu.memory_space<vmem>>, vector<8x1xf32>,
      %c0_12 = arith.constant 0 : index
      %c0_13 = arith.constant 0 : index
      %25 = vector.load %arg4[%c0_12, %c0_13] : memref<8x1xf32, #tpu.memory_space<vmem>>, vector<8x1xf32>
      tpu.vector_store %arg4[%c0_12, %c0_13], %18 {strides = array<i32>} : memref<8x1xf32, #tpu.memory_space<vmem>>, vector<8x1xf32>,
    } else {
    }
    %c0_i32_2 = arith.constant 0 : i32
    %4 = arith.cmpi sgt, %arg1, %c0_i32_2 : i32
    %5 = arith.extui %4 : i1 to i32
    %c0_i32_3 = arith.constant 0 : i32
    %6 = arith.cmpi ne, %5, %c0_i32_3 : i32
    scf.if %6 {
      %c0_6 = arith.constant 0 : index
      %c0_7 = arith.constant 0 : index
      %10 = vector.load %arg4[%c0_6, %c0_7] : memref<8x1xf32, #tpu.memory_space<vmem>>, vector<8x1xf32>
      %cst = arith.constant dense<0xFF800000> : vector<8xf32>
      %11 = vector.multi_reduction <maximumf>, %0, %cst [1] : vector<8x32xf32> to vector<8xf32>
      %12 = vector.shape_cast %11 : vector<8xf32> to vector<8x1xf32>
      %13 = arith.maximumf %10, %12 : vector<8x1xf32>
      %c0_8 = arith.constant 0 : index
      %c0_9 = arith.constant 0 : index
      %14 = vector.load %arg5[%c0_8, %c0_9] : memref<8x1xf32, #tpu.memory_space<vmem>>, vector<8x1xf32>
      %15 = arith.subf %10, %13 : vector<8x1xf32>
      %16 = math.exp %15 : vector<8x1xf32>
      %17 = arith.mulf %14, %16 : vector<8x1xf32>
      %18 = vector.broadcast %13 : vector<8x1xf32> to vector<8x32xf32>
      %19 = arith.subf %0, %18 : vector<8x32xf32>
      %20 = math.exp %19 : vector<8x32xf32>
      %cst_10 = arith.constant dense<0.000000e+00> : vector<8xf32>
      %21 = vector.multi_reduction <add>, %20, %cst_10 [1] : vector<8x32xf32> to vector<8xf32>
      %22 = vector.shape_cast %21 : vector<8xf32> to vector<8x1xf32>
      %23 = arith.addf %17, %22 : vector<8x1xf32>
      %c0_11 = arith.constant 0 : index
      %c0_12 = arith.constant 0 : index
      %24 = vector.load %arg5[%c0_11, %c0_12] : memref<8x1xf32, #tpu.memory_space<vmem>>, vector<8x1xf32>
      tpu.vector_store %arg5[%c0_11, %c0_12], %23 {strides = array<i32>} : memref<8x1xf32, #tpu.memory_space<vmem>>, vector<8x1xf32>,
      %c0_13 = arith.constant 0 : index
      %c0_14 = arith.constant 0 : index
      %25 = vector.load %arg4[%c0_13, %c0_14] : memref<8x1xf32, #tpu.memory_space<vmem>>, vector<8x1xf32>
      tpu.vector_store %arg4[%c0_13, %c0_14], %13 {strides = array<i32>} : memref<8x1xf32, #tpu.memory_space<vmem>>, vector<8x1xf32>,
    } else {
    }
    %c0_i32_4 = arith.constant 0 : i32
    %7 = arith.cmpi eq, %arg1, %c0_i32_4 : i32
    %8 = arith.extui %7 : i1 to i32
    %c0_i32_5 = arith.constant 0 : i32
    %9 = arith.cmpi ne, %8, %c0_i32_5 : i32
    scf.if %9 {
      %c0_6 = arith.constant 0 : index
      %c0_7 = arith.constant 0 : index
      %10 = vector.load %arg4[%c0_6, %c0_7] : memref<8x1xf32, #tpu.memory_space<vmem>>, vector<8x1xf32>
      %c0_8 = arith.constant 0 : index
      %c0_9 = arith.constant 0 : index
      %11 = vector.load %arg5[%c0_8, %c0_9] : memref<8x1xf32, #tpu.memory_space<vmem>>, vector<8x1xf32>
      %12 = math.log %11 : vector<8x1xf32>
      %13 = arith.addf %10, %12 : vector<8x1xf32>
      %c0_10 = arith.constant 0 : index
      %c0_11 = arith.constant 0 : index
      %14 = vector.load %arg6[%c0_10, %c0_11] : memref<8x1xf32, #tpu.memory_space<vmem>>, vector<8x1xf32>
      %15 = arith.subf %13, %14 : vector<8x1xf32>
      %cst = arith.constant dense<0.000000e+00> : vector<1xf32>
      %16 = vector.multi_reduction <add>, %15, %cst [0] : vector<8x1xf32> to vector<1xf32>
      %17 = vector.shape_cast %16 : vector<1xf32> to vector<1x1xf32>
      %18 = vector.shape_cast %17 : vector<1x1xf32> to vector<1x1xf32>
      %19 = vector.broadcast %18 : vector<1x1xf32> to vector<8x128xf32>
      %c0_12 = arith.constant 0 : index
      %c0_13 = arith.constant 0 : index
      %20 = vector.load %arg3[%c0_12, %c0_13] : memref<8x128xf32, #tpu.memory_space<vmem>>, vector<8x128xf32>
      tpu.vector_store %arg3[%c0_12, %c0_13], %19 {strides = array<i32>} : memref<8x128xf32, #tpu.memory_space<vmem>>, vector<8x128xf32>,
    } else {
    }
    return
  }
  func.func @transform_0(%arg0: i32, %arg1: i32) -> (i32, i32) {
    %c0_i32 = arith.constant 0 : i32
    return %arg0, %arg1 : i32, i32
  }
  func.func @transform_1(%arg0: i32, %arg1: i32) -> (i32, i32) {
    %c0_i32 = arith.constant 0 : i32
    %c0_i32_0 = arith.constant 0 : i32
    return %arg0, %c0_i32 : i32, i32
  }
}

</mosaic_0001>

<llo_original>
// kernel: tpu_custom_call.1
$region0: #{tpu_custom_call.1}
  #allocation0 [shape = 'u32[]', space=smem, size = 0x4, offset = 0x4, fixed_abs, tag = 'smem constant byte address 0x4 - core index']
  #allocation1 [shape = 'u32[72,128]{1,0:T(1,128)}', space=vmem, size = 0x9000, scoped, tag = 'internal scratch']
  #allocation2 [shape = 'f32[8,1]{1,0:T(8,128)}', space=vmem, size = 0x1000, scoped, tag = 'scratch operand']
  #allocation3 [shape = 'f32[8,1]{1,0:T(8,128)}', space=vmem, size = 0x1000, scoped, tag = 'scratch operand']
  #allocation4 [shape = 'f32[8,1]{1,0:T(8,128)}', space=vmem, size = 0x1000, scoped, tag = 'scratch operand']
  %s0 = inlined_call_operand.hbm [shape: f32[8,32], index: 0, kind: input, shape index: {}]
  %s1 = inlined_call_operand.hbm [shape: f32[8,128], index: 1, kind: output, shape index: {}]
  %s2 = sld [smem:[#allocation0]]
  $region30: #{tpu_custom_call.1} parent=0
    _
  %s4 = ssub.s32 1, %s2
  %s5 = scalar_select 0, %s4, %s2
  $region1: #{tpu_custom_call.1} parent=0
    #allocation5 [shape = 'u8[4096]{0}', space=vmem, size = 0x1000, scoped, tag = 'input window, operand 0, single buffered']
    #allocation6 [shape = 's32[1]{0}', space=sflag, size = 0x4, scoped, tag = 'scoped memory for tpu_custom_call.1']
    #allocation7 [shape = 's32[1]{0}', space=sflag, size = 0x4, scoped, tag = 'scoped memory for tpu_custom_call.1']
    #allocation8 [shape = 'u8[4096]{0}', space=vmem, size = 0x1000, scoped, tag = 'output window, operand 0, single buffered']
    %6 = vsyncpa [#allocation6], 0
    %7 = vsyncpa [#allocation7], 0
    // Predicated region
    $region2: #{tpu_custom_call.1} parent=1 // pred_check
      _
    $region3: #{tpu_custom_call.1} parent=1 // pred_check_branch
      %9 = sbr.rel (0) target = $region5
    $region4: #{tpu_custom_call.1} parent=1 // pred_region
      %11 = vsyncadd [#allocation6], 0
      %s13 = sshll.u32 %s0, 4
      %s14 = int_to_ptr.hbm [resolvable:$true] %s13
      %s15 = sshll.u32 [#allocation5], 4
      %s16 = int_to_ptr.vmem [resolvable:$true] %s15
      %18 = dma.hbm_to_vmem [thread:$0]  %s14, 128, %s16, [#allocation6]
    $region5: #{tpu_custom_call.1} parent=1 // pred_fallthru
      _
    // Predicated region
    $region6: #{tpu_custom_call.1} parent=1 // pred_check
      _
    $region7: #{tpu_custom_call.1} parent=1 // pred_check_branch
      %20 = sbr.rel (0) target = $region9
    $region8: #{tpu_custom_call.1} parent=1 // pred_region
      %22 = dma.done [#allocation6], 128
    $region9: #{tpu_custom_call.1} parent=1 // pred_fallthru
      _
    %v23 = vld [vmem:[#allocation5] sm:$0xff]
    %p24 = scmp.eq.s32.totalorder 0, 0
    // Predicated region
    $region10: #{tpu_custom_call.1} parent=1 // pred_check
      %p25 = pneg %p24
    $region11: #{tpu_custom_call.1} parent=1 // pred_check_branch
      %27 = sbr.rel (%p25) target = $region13
    $region12: #{tpu_custom_call.1} parent=1 // pred_region
      %vm28 = vcmask 7168
      %29 = vst.msk [vmem:[#allocation4] sm:$0xff] %vm28, %v23
      %v30 = vlaneseq
      %v31 = vand.u32 %v30, 127
      %vm32 = vcmp.ge.s32.totalorder %v31, 1
      %v33 = vsel %vm32, %v23, -inf
      %vm34 = vcmask 261120
      %v35 = vsel %vm34, %v33, -inf
      %36 = vmax.xlane.f32.xlu0 %v35
      %v37 = vpop.xlane.xlu0 %36
      %v38 = vsub.f32 %v33, %v37
      %v39 = vmul.f32 %v38, 1.442695
      %v40 = vpow.pop %v39
      %v41 = vsel %vm34, %v40, 0.0
      %42 = vadd.xlane.f32.xlu0 %v41
      %v43 = vpop.xlane.xlu0 %42
      %44 = vst.msk [vmem:[#allocation3] sm:$0xff] %vm28, %v43
      %45 = vst.msk [vmem:[#allocation2] sm:$0xff] %vm28, %v37
    $region13: #{tpu_custom_call.1} parent=1 // pred_fallthru
      _
    %p46 = scmp.gt.s32.totalorder 0, 0
    // Predicated region
    $region14: #{tpu_custom_call.1} parent=1 // pred_check
      %p47 = pneg %p46
    $region15: #{tpu_custom_call.1} parent=1 // pred_check_branch
      %49 = sbr.rel (%p47) target = $region17
    $region16: #{tpu_custom_call.1} parent=1 // pred_region
      %v50 = vld [vmem:[#allocation2] sm:$0xff]
      %vm51 = vcmask 261120
      %v52 = vsel %vm51, %v23, -inf
      %53 = vmax.xlane.f32.xlu0 %v52
      %v54 = vpop.xlane.xlu0 %53
      %v55 = vmax.f32 %v50, %v54
      %v56 = vld [vmem:[#allocation3] sm:$0xff]
      %v57 = vsub.f32 %v50, %v55
      %v58 = vmul.f32 %v57, 1.442695
      %v59 = vpow.pop %v58
      %v60 = vmul.f32 %v56, %v59
      %62 = vset.pattern.permute.xlu0 0
      %63 = vperm.xlu0 %62, %v55
      %v64 = vpop.permute.xlu0 %63
      %v66 = vsub.f32 %v23, %v64
      %v67 = vmul.f32 %v66, 1.442695
      %v68 = vpow.pop %v67
      %v69 = vsel %vm51, %v68, 0.0
      %70 = vadd.xlane.f32.xlu0 %v69
      %v71 = vpop.xlane.xlu0 %70
      %v72 = vadd.f32 %v60, %v71
      %vm73 = vcmask 7168
      %74 = vst.msk [vmem:[#allocation3] sm:$0xff] %vm73, %v72
      %75 = vst.msk [vmem:[#allocation2] sm:$0xff] %vm73, %v55
    $region17: #{tpu_custom_call.1} parent=1 // pred_fallthru
      _
    // Predicated region
    $region18: #{tpu_custom_call.1} parent=1 // pred_check
      %p76 = pneg %p24
    $region19: #{tpu_custom_call.1} parent=1 // pred_check_branch
      %78 = sbr.rel (%p76) target = $region21
    $region20: #{tpu_custom_call.1} parent=1 // pred_region
      %v79 = vld [vmem:[#allocation2] sm:$0xff]
      %v80 = vld [vmem:[#allocation3] sm:$0xff]
      %v81 = vlog2.pop %v80
      %v82 = vmul.f32 %v81, 0.6931472
      %v83 = vadd.f32 %v79, %v82
      %v84 = vld [vmem:[#allocation4] sm:$0xff]
      %v85 = vsub.f32 %v83, %v84
      %vm86 = vcmask 7168
      %v87 = vsel %vm86, %v85, 0.0
      %v88 = vrot.slane %v87, 4
      %v89 = vadd.f32 %v87, %v88
      %v90 = vrot.slane %v89, 2
      %v91 = vadd.f32 %v89, %v90
      %v92 = vrot.slane %v91, 1
      %v93 = vadd.f32 %v91, %v92
      %95 = vset.pattern.permute.xlu0 0
      %96 = vperm.xlu0 %95, %v93
      %v97 = vpop.permute.xlu0 %96
      %99 = vst [vmem:[#allocation8] sm:$0xff] %v97
    $region21: #{tpu_custom_call.1} parent=1 // pred_fallthru
      _
    // Predicated region
    $region22: #{tpu_custom_call.1} parent=1 // pred_check
      _
    $region23: #{tpu_custom_call.1} parent=1 // pred_check_branch
      %101 = sbr.rel (0) target = $region25
    $region24: #{tpu_custom_call.1} parent=1 // pred_region
      %103 = vsyncadd [#allocation7], 0
      %s105 = sshll.u32 [#allocation8], 4
      %s106 = int_to_ptr.vmem [resolvable:$true] %s105
      %s107 = sshll.u32 %s1, 4
      %s108 = int_to_ptr.hbm [resolvable:$true] %s107
      %110 = dma.vmem_to_hbm [thread:$0]  %s106, 128, %s108, [#allocation7]
    $region25: #{tpu_custom_call.1} parent=1 // pred_fallthru
      _
    // Predicated region
    $region26: #{tpu_custom_call.1} parent=1 // pred_check
      _
    $region27: #{tpu_custom_call.1} parent=1 // pred_check_branch
      %112 = sbr.rel (0) target = $region29
    $region28: #{tpu_custom_call.1} parent=1 // pred_region
      %114 = dma.done [#allocation7], 128
    $region29: #{tpu_custom_call.1} parent=1 // pred_fallthru
      _
    %115 = vsyncpa [#allocation6], 1
    %116 = vsyncpa [#allocation7], 1

</llo_original>
